<compile_context>
chip_gen: v7x
topology: tpu7x:2x2x1
jax: 0.10.0
libtpu: 0.0.40
codegen_flags: <defaults>
</compile_context>

<pallas_src>
import functools

import jax
import jax.numpy as jnp
from jax.experimental import pallas as pl
from jax.experimental.pallas import tpu as pltpu

EPS = 1e-5  # nn.LayerNorm default


def _round_up(n, m):
    return ((n + m - 1) // m) * m


def _sublayer_connection_kernel(seed_ref, x_ref, gamma_ref, beta_ref, w_ref,
                                bl_ref, o_ref, *, keep_prob, row_tile):
    # ---- LayerNorm(x) over the hidden (last) axis, f32 math ----
    x = x_ref[...].astype(jnp.float32)                        # (tile, H)
    mean = jnp.mean(x, axis=-1, keepdims=True)
    var = jnp.mean((x - mean) ** 2, axis=-1, keepdims=True)
    xn = (x - mean) * jax.lax.rsqrt(var + EPS)
    xn = xn * gamma_ref[...] + beta_ref[...]                   # (1, H) broadcast

    # ---- sublayer: dense(H -> H); bf16 operands on the MXU, f32 accumulate ----
    sub = jnp.dot(xn.astype(jnp.bfloat16), w_ref[...],
                  preferred_element_type=jnp.float32)
    sub = sub + bl_ref[...]

    # ---- inverted dropout (train mode only) + residual ----
    if keep_prob < 1.0:
        # Counter-based hash PRNG keyed on (seed, global_row, col): cheap VPU
        # integer ops, independent of tiling, single threshold compare + select.
        shape = sub.shape
        row0 = pl.program_id(0) * row_tile
        rows = (jax.lax.broadcasted_iota(jnp.int32, shape, 0) + row0).astype(jnp.uint32)
        cols = jax.lax.broadcasted_iota(jnp.int32, shape, 1).astype(jnp.uint32)
        z = (seed_ref[0].astype(jnp.uint32)
             + rows * jnp.uint32(0x9E3779B9)
             + cols * jnp.uint32(0x85EBCA6B))
        z = z ^ (z >> 16)
        z = z * jnp.uint32(0x7FEB352D)
        z = z ^ (z >> 15)
        z = z * jnp.uint32(0x846CA68B)
        z = z ^ (z >> 16)
        bits31 = (z >> 1).astype(jnp.int32)                    # uniform in [0, 2^31)
        thr = jnp.int32(min(int(keep_prob * (1 << 31)), (1 << 31) - 1))
        sub = jnp.where(bits31 < thr, sub * (1.0 / keep_prob), 0.0)

    o_ref[...] = (x + sub).astype(o_ref.dtype)


def sublayer_connection(x, gamma, beta, w, b_lin, *, dropout_p=0.1, seed=0,
                        row_tile=256):
    """x: (B, S, H). Returns x + dropout(linear(layernorm(x)))."""
    B, S, H = x.shape
    R = B * S

    # Effective row tile: multiple of 8, no larger than the padded row count.
    tile = min(int(row_tile), _round_up(R, 8))
    tile = max(8, (tile // 8) * 8)
    Rp = _round_up(R, tile)

    x2 = x.reshape(R, H)
    if Rp != R:
        x2 = jnp.pad(x2, ((0, Rp - R), (0, 0)))

    gamma2 = gamma.reshape(1, H).astype(jnp.float32)
    beta2 = beta.reshape(1, H).astype(jnp.float32)
    bl2 = b_lin.reshape(1, H).astype(jnp.float32)
    w_bf = w.astype(jnp.bfloat16)                 # halve W's VMEM/DMA, double MXU rate
    seed_arr = jnp.array([seed], dtype=jnp.int32)

    kernel = functools.partial(_sublayer_connection_kernel,
                               keep_prob=1.0 - float(dropout_p),
                               row_tile=tile)

    # Rough VMEM budget; raise the scoped limit only when the tiles need it
    # (stays within v7x's 64 MiB physical VMEM).
    vmem_est = (2 * 2 * tile * H * 4          # x & out tiles, double-buffered, f32
                + H * H * 2                   # resident bf16 weight
                + 6 * H * 4)                  # gamma / beta / bias
    vmem_limit = int(min(2 * vmem_est, 64 * 2 ** 20)) if vmem_est > 24 * 2 ** 20 else None

    cost = pl.CostEstimate(
        flops=2 * Rp * H * H,
        transcendentals=Rp,                    # rsqrt per row
        bytes_accessed=2 * Rp * H * 4 + H * H * 2)

    out2 = pl.pallas_call(
        kernel,
        out_shape=jax.ShapeDtypeStruct((Rp, H), x.dtype),
        grid_spec=pltpu.PrefetchScalarGridSpec(
            num_scalar_prefetch=1,
            grid=(Rp // tile,),
            in_specs=[
                pl.BlockSpec((tile, H), lambda i, seed: (i, 0)),   # x
                pl.BlockSpec((1, H), lambda i, seed: (0, 0)),      # LN gamma
                pl.BlockSpec((1, H), lambda i, seed: (0, 0)),      # LN beta
                pl.BlockSpec((H, H), lambda i, seed: (0, 0)),      # W (bf16, resident)
                pl.BlockSpec((1, H), lambda i, seed: (0, 0)),      # linear bias
            ],
            out_specs=pl.BlockSpec((tile, H), lambda i, seed: (i, 0)),
        ),
        compiler_params=pltpu.CompilerParams(
            dimension_semantics=("parallel",),
            vmem_limit_bytes=vmem_limit),
        cost_estimate=cost,
    )(seed_arr, x2, gamma2, beta2, w_bf, bl2)

    if Rp != R:
        out2 = out2[:R]
    return out2.reshape(B, S, H)


if __name__ == "__main__":
    B, S, H = 2, 8, 32
    key = jax.random.PRNGKey(0)
    kx, kw, kb = jax.random.split(key, 3)

    x = jax.random.normal(kx, (B, S, H), dtype=jnp.float32)

    # Deterministic parameter init.
    gamma = jnp.ones((H,), dtype=jnp.float32)       # nn.LayerNorm weight
    beta = jnp.zeros((H,), dtype=jnp.float32)       # nn.LayerNorm bias
    # Example sublayer: dense H->H (weight stored (H_in, H_out)).
    w = jax.random.normal(kw, (H, H), dtype=jnp.float32) * 0.05
    b_lin = jax.random.normal(kb, (H,), dtype=jnp.float32) * 0.01

    # Train-mode call (dropout active).
    out = sublayer_connection(x, gamma, beta, w, b_lin, dropout_p=0.1, seed=42)
    jax.block_until_ready(out)
    assert out.shape == (B, S, H)
    assert bool(jnp.all(jnp.isfinite(out)))

    # Eval-mode call (dropout disabled) checked against a pure-JAX reference
    # that uses the same bf16 matmul operands.
    out_eval = sublayer_connection(x, gamma, beta, w, b_lin, dropout_p=0.0, seed=0)
    mean = jnp.mean(x, axis=-1, keepdims=True)
    var = jnp.mean((x - mean) ** 2, axis=-1, keepdims=True)
    xn = (x - mean) / jnp.sqrt(var + EPS) * gamma + beta
    lin = jnp.dot(xn.reshape(-1, H).astype(jnp.bfloat16), w.astype(jnp.bfloat16),
                  preferred_element_type=jnp.float32).reshape(B, S, H) + b_lin
    ref = x + lin
    assert jnp.allclose(out_eval, ref, atol=1e-2, rtol=1e-2)

    print("KERNEL_OK")
</pallas_src>

<mosaic_0001>
module attributes {stable_mosaic.version = 11 : i64} {
  func.func @_sublayer_connection_kernel(%arg0: i32, %arg1: memref<1xi32, #tpu.memory_space<smem>>, %arg2: memref<16x32xf32, #tpu.memory_space<vmem>>, %arg3: memref<1x32xf32, #tpu.memory_space<vmem>>, %arg4: memref<1x32xf32, #tpu.memory_space<vmem>>, %arg5: memref<32x32xbf16, #tpu.memory_space<vmem>>, %arg6: memref<1x32xf32, #tpu.memory_space<vmem>>, %arg7: memref<16x32xf32, #tpu.memory_space<vmem>>) attributes {dimension_semantics = [#tpu.dimension_semantics<parallel>], iteration_bounds = array<i64: 1>, scalar_prefetch = 1 : i64, scratch_operands = 0 : i64, tpu.core_type = #tpu.core_type<tc>, window_params = [{transform_indices = @transform_0, window_bounds = array<i64: 16, 32>}, {pipeline_mode = #tpu.pipeline_mode<synchronous>, transform_indices = @transform_1, window_bounds = array<i64: 1, 32>}, {pipeline_mode = #tpu.pipeline_mode<synchronous>, transform_indices = @transform_2, window_bounds = array<i64: 1, 32>}, {pipeline_mode = #tpu.pipeline_mode<synchronous>, transform_indices = @transform_3, window_bounds = array<i64: 32, 32>}, {pipeline_mode = #tpu.pipeline_mode<synchronous>, transform_indices = @transform_4, window_bounds = array<i64: 1, 32>}, {transform_indices = @transform_5, window_bounds = array<i64: 16, 32>}]} {
    %c0 = arith.constant 0 : index
    %c0_0 = arith.constant 0 : index
    %0 = vector.load %arg2[%c0, %c0_0] : memref<16x32xf32, #tpu.memory_space<vmem>>, vector<16x32xf32>
    %cst = arith.constant dense<0.000000e+00> : vector<16xf32>
    %1 = vector.multi_reduction <add>, %0, %cst [1] : vector<16x32xf32> to vector<16xf32>
    %2 = vector.shape_cast %1 : vector<16xf32> to vector<16x1xf32>
    %cst_1 = arith.constant 3.200000e+01 : f32
    %3 = vector.broadcast %cst_1 : f32 to vector<16x1xf32>
    %4 = arith.divf %2, %3 : vector<16x1xf32>
    %5 = vector.broadcast %4 : vector<16x1xf32> to vector<16x32xf32>
    %6 = arith.subf %0, %5 : vector<16x32xf32>
    %7 = arith.mulf %6, %6 : vector<16x32xf32>
    %cst_2 = arith.constant dense<0.000000e+00> : vector<16xf32>
    %8 = vector.multi_reduction <add>, %7, %cst_2 [1] : vector<16x32xf32> to vector<16xf32>
    %9 = vector.shape_cast %8 : vector<16xf32> to vector<16x1xf32>
    %cst_3 = arith.constant 3.200000e+01 : f32
    %10 = vector.broadcast %cst_3 : f32 to vector<16x1xf32>
    %11 = arith.divf %9, %10 : vector<16x1xf32>
    %12 = vector.broadcast %4 : vector<16x1xf32> to vector<16x32xf32>
    %13 = arith.subf %0, %12 : vector<16x32xf32>
    %cst_4 = arith.constant 9.99999974E-6 : f32
    %14 = vector.broadcast %cst_4 : f32 to vector<16x1xf32>
    %15 = arith.addf %11, %14 : vector<16x1xf32>
    %16 = math.rsqrt %15 : vector<16x1xf32>
    %17 = vector.broadcast %16 : vector<16x1xf32> to vector<16x32xf32>
    %18 = arith.mulf %13, %17 : vector<16x32xf32>
    %c0_5 = arith.constant 0 : index
    %c0_6 = arith.constant 0 : index
    %19 = vector.load %arg3[%c0_5, %c0_6] : memref<1x32xf32, #tpu.memory_space<vmem>>, vector<1x32xf32>
    %20 = vector.broadcast %19 : vector<1x32xf32> to vector<16x32xf32>
    %21 = arith.mulf %18, %20 : vector<16x32xf32>
    %c0_7 = arith.constant 0 : index
    %c0_8 = arith.constant 0 : index
    %22 = vector.load %arg4[%c0_7, %c0_8] : memref<1x32xf32, #tpu.memory_space<vmem>>, vector<1x32xf32>
    %23 = vector.broadcast %22 : vector<1x32xf32> to vector<16x32xf32>
    %24 = arith.addf %21, %23 : vector<16x32xf32>
    %25 = arith.truncf %24 : vector<16x32xf32> to vector<16x32xbf16>
    %c0_9 = arith.constant 0 : index
    %c0_10 = arith.constant 0 : index
    %26 = vector.load %arg5[%c0_9, %c0_10] : memref<32x32xbf16, #tpu.memory_space<vmem>>, vector<32x32xbf16>
    %cst_11 = arith.constant dense<0.000000e+00> : vector<16x32xf32>
    %27 = tpu.matmul %25, %26, %cst_11 {dimension_numbers = #tpu.dot_dimension_numbers<[1], [0], [0], [1], [0, 0, 1, 1], [], []>} : vector<16x32xbf16>, vector<32x32xbf16>, vector<16x32xf32> -> vector<16x32xf32>
    %c0_12 = arith.constant 0 : index
    %c0_13 = arith.constant 0 : index
    %28 = vector.load %arg6[%c0_12, %c0_13] : memref<1x32xf32, #tpu.memory_space<vmem>>, vector<1x32xf32>
    %29 = vector.broadcast %28 : vector<1x32xf32> to vector<16x32xf32>
    %30 = arith.addf %27, %29 : vector<16x32xf32>
    %c16_i32 = arith.constant 16 : i32
    %31 = arith.muli %arg0, %c16_i32 : i32
    %32 = tpu.iota {dimensions = array<i32: 0>} : vector<16x32xi32>
    %33 = vector.broadcast %31 : i32 to vector<16x32xi32>
    %34 = arith.addi %32, %33 : vector<16x32xi32>
    %35 = tpu.iota {dimensions = array<i32: 1>} : vector<16x32xi32>
    %c0_14 = arith.constant 0 : index
    %36 = memref.load %arg1[%c0_14] : memref<1xi32, #tpu.memory_space<smem>>
    %c-1640531527_i32 = arith.constant -1640531527 : i32
    %37 = vector.broadcast %c-1640531527_i32 : i32 to vector<16x32xi32>
    %38 = arith.muli %34, %37 : vector<16x32xi32>
    %39 = vector.broadcast %36 : i32 to vector<16x32xi32>
    %40 = arith.addi %39, %38 : vector<16x32xi32>
    %c-2048144789_i32 = arith.constant -2048144789 : i32
    %41 = vector.broadcast %c-2048144789_i32 : i32 to vector<16x32xi32>
    %42 = arith.muli %35, %41 : vector<16x32xi32>
    %43 = arith.addi %40, %42 : vector<16x32xi32>
    %c16_i32_15 = arith.constant 16 : i32
    %44 = vector.broadcast %c16_i32_15 : i32 to vector<16x32xi32>
    %45 = arith.shrui %43, %44 : vector<16x32xi32>
    %46 = arith.xori %43, %45 : vector<16x32xi32>
    %c2146121005_i32 = arith.constant 2146121005 : i32
    %47 = vector.broadcast %c2146121005_i32 : i32 to vector<16x32xi32>
    %48 = arith.muli %46, %47 : vector<16x32xi32>
    %c15_i32 = arith.constant 15 : i32
    %49 = vector.broadcast %c15_i32 : i32 to vector<16x32xi32>
    %50 = arith.shrui %48, %49 : vector<16x32xi32>
    %51 = arith.xori %48, %50 : vector<16x32xi32>
    %c-2073254261_i32 = arith.constant -2073254261 : i32
    %52 = vector.broadcast %c-2073254261_i32 : i32 to vector<16x32xi32>
    %53 = arith.muli %51, %52 : vector<16x32xi32>
    %c16_i32_16 = arith.constant 16 : i32
    %54 = vector.broadcast %c16_i32_16 : i32 to vector<16x32xi32>
    %55 = arith.shrui %53, %54 : vector<16x32xi32>
    %56 = arith.xori %53, %55 : vector<16x32xi32>
    %c1_i32 = arith.constant 1 : i32
    %57 = vector.broadcast %c1_i32 : i32 to vector<16x32xi32>
    %58 = arith.shrui %56, %57 : vector<16x32xi32>
    %c1932735283_i32 = arith.constant 1932735283 : i32
    %59 = vector.broadcast %c1932735283_i32 : i32 to vector<16x32xi32>
    %60 = arith.cmpi slt, %58, %59 : vector<16x32xi32>
    %cst_17 = arith.constant 1.11111116 : f32
    %61 = vector.broadcast %cst_17 : f32 to vector<16x32xf32>
    %62 = arith.mulf %30, %61 : vector<16x32xf32>
    %cst_18 = arith.constant 0.000000e+00 : f32
    %63 = vector.broadcast %cst_18 : f32 to vector<16x32xf32>
    %64 = arith.select %60, %62, %63 : vector<16x32xi1>, vector<16x32xf32>
    %65 = arith.addf %0, %64 : vector<16x32xf32>
    %c0_19 = arith.constant 0 : index
    %c0_20 = arith.constant 0 : index
    %66 = vector.load %arg7[%c0_19, %c0_20] : memref<16x32xf32, #tpu.memory_space<vmem>>, vector<16x32xf32>
    tpu.vector_store %arg7[%c0_19, %c0_20], %65 {strides = array<i32>} : memref<16x32xf32, #tpu.memory_space<vmem>>, vector<16x32xf32>,
    return
  }
  func.func @transform_0(%arg0: i32, %arg1: memref<1xi32, #tpu.memory_space<smem>>) -> (i32, i32) {
    %c0_i32 = arith.constant 0 : i32
    %c0_i32_0 = arith.constant 0 : i32
    return %arg0, %c0_i32 : i32, i32
  }
  func.func @transform_1(%arg0: i32, %arg1: memref<1xi32, #tpu.memory_space<smem>>) -> (i32, i32) {
    %c0_i32 = arith.constant 0 : i32
    %c0_i32_0 = arith.constant 0 : i32
    %c0_i32_1 = arith.constant 0 : i32
    return %c0_i32, %c0_i32_0 : i32, i32
  }
  func.func @transform_2(%arg0: i32, %arg1: memref<1xi32, #tpu.memory_space<smem>>) -> (i32, i32) {
    %c0_i32 = arith.constant 0 : i32
    %c0_i32_0 = arith.constant 0 : i32
    %c0_i32_1 = arith.constant 0 : i32
    return %c0_i32, %c0_i32_0 : i32, i32
  }
  func.func @transform_3(%arg0: i32, %arg1: memref<1xi32, #tpu.memory_space<smem>>) -> (i32, i32) {
    %c0_i32 = arith.constant 0 : i32
    %c0_i32_0 = arith.constant 0 : i32
    %c0_i32_1 = arith.constant 0 : i32
    return %c0_i32, %c0_i32_0 : i32, i32
  }
  func.func @transform_4(%arg0: i32, %arg1: memref<1xi32, #tpu.memory_space<smem>>) -> (i32, i32) {
    %c0_i32 = arith.constant 0 : i32
    %c0_i32_0 = arith.constant 0 : i32
    %c0_i32_1 = arith.constant 0 : i32
    return %c0_i32, %c0_i32_0 : i32, i32
  }
  func.func @transform_5(%arg0: i32, %arg1: memref<1xi32, #tpu.memory_space<smem>>) -> (i32, i32) {
    %c0_i32 = arith.constant 0 : i32
    %c0_i32_0 = arith.constant 0 : i32
    return %arg0, %c0_i32 : i32, i32
  }
}

</mosaic_0001>

<llo_original>
// kernel: tpu_custom_call.1
$region0: #{tpu_custom_call.1}
  #allocation0 [shape = 'u32[]', space=smem, size = 0x4, offset = 0x4, fixed_abs, tag = 'smem constant byte address 0x4 - core index']
  #allocation1 [shape = 'u32[144,128]{1,0:T(1,128)}', space=vmem, size = 0x12000, scoped, tag = 'internal scratch']
  #allocation2 [shape = 's32[1]{0}', space=sflag, size = 0x4, scoped, tag = 'scoped memory for tpu_custom_call.1']
  #allocation3 [shape = 's32[1]{0:T(128)S(6)}', space=smem, size = 0x200, scoped, tag = 'prefetched SMEM operand 0']
  %s0 = inlined_call_operand.<no memory space> [shape: s32[1], index: 0, kind: input, shape index: {}]
  %s1 = inlined_call_operand.hbm [shape: f32[16,32], index: 1, kind: input, shape index: {}]
  %s2 = inlined_call_operand.vmem [shape: f32[1,32], index: 2, kind: input, shape index: {}]
  %s3 = inlined_call_operand.vmem [shape: f32[1,32], index: 3, kind: input, shape index: {}]
  %s4 = inlined_call_operand.hbm [shape: bf16[32,32], index: 4, kind: input, shape index: {}]
  %s5 = inlined_call_operand.vmem [shape: f32[1,32], index: 5, kind: input, shape index: {}]
  %s6 = inlined_call_operand.hbm [shape: f32[16,32], index: 6, kind: output, shape index: {}]
  %s7 = sld [smem:[#allocation0]]
  $region38: #{tpu_custom_call.1} parent=0
    _
  %s9 = ssub.s32 1, %s7
  %s10 = scalar_select 0, %s9, %s7
  %11 = sst [smem:[#allocation3]] %s0
  $region1: #{tpu_custom_call.1} parent=0
    #allocation4 [shape = 'u8[8192]{0}', space=vmem, size = 0x2000, scoped, tag = 'input window, operand 1, single buffered']
    #allocation5 [shape = 's32[1]{0}', space=sflag, size = 0x4, scoped, tag = 'scoped memory for tpu_custom_call.1']
    #allocation6 [shape = 's32[1]{0}', space=sflag, size = 0x4, scoped, tag = 'scoped memory for tpu_custom_call.1']
    #allocation7 [shape = 'u8[8192]{0}', space=vmem, size = 0x2000, scoped, tag = 'input window, operand 4, single buffered']
    #allocation8 [shape = 's32[1]{0}', space=sflag, size = 0x4, scoped, tag = 'scoped memory for tpu_custom_call.1']
    #allocation9 [shape = 'u8[8192]{0}', space=vmem, size = 0x2000, scoped, tag = 'output window, operand 0, single buffered']
    %12 = vsyncpa [#allocation5], 0
    %13 = vsyncpa [#allocation8], 0
    %14 = vsyncpa [#allocation6], 0
    // Predicated region
    $region2: #{tpu_custom_call.1} parent=1 // pred_check
      _
    $region3: #{tpu_custom_call.1} parent=1 // pred_check_branch
      %16 = sbr.rel (0) target = $region5
    $region4: #{tpu_custom_call.1} parent=1 // pred_region
      %s18 = ssub.s32 256, 256
      %19 = vsyncadd [#allocation5], %s18
      %s20 = sshll.u32 [#allocation4], 4
      %s21 = int_to_ptr.vmem [resolvable:$true] %s20
      %26 = dma.hbm_to_vmem [thread:$0]  %s1, 256, %s21, [#allocation5], 128, 128, 8
    $region5: #{tpu_custom_call.1} parent=1 // pred_fallthru
      _
    // Predicated region
    $region6: #{tpu_custom_call.1} parent=1 // pred_check
      _
    $region7: #{tpu_custom_call.1} parent=1 // pred_check_branch
      %28 = sbr.rel (0) target = $region9
    $region8: #{tpu_custom_call.1} parent=1 // pred_region
      _
    $region9: #{tpu_custom_call.1} parent=1 // pred_fallthru
      _
    // Predicated region
    $region10: #{tpu_custom_call.1} parent=1 // pred_check
      _
    $region11: #{tpu_custom_call.1} parent=1 // pred_check_branch
      %30 = sbr.rel (0) target = $region13
    $region12: #{tpu_custom_call.1} parent=1 // pred_region
      _
    $region13: #{tpu_custom_call.1} parent=1 // pred_fallthru
      _
    // Predicated region
    $region14: #{tpu_custom_call.1} parent=1 // pred_check
      _
    $region15: #{tpu_custom_call.1} parent=1 // pred_check_branch
      %32 = sbr.rel (0) target = $region17
    $region16: #{tpu_custom_call.1} parent=1 // pred_region
      %s34 = ssub.s32 256, 256
      %35 = vsyncadd [#allocation8], %s34
      %s36 = sshll.u32 [#allocation7], 4
      %s37 = int_to_ptr.vmem [resolvable:$true] %s36
      %42 = dma.hbm_to_vmem [thread:$0]  %s4, 256, %s37, [#allocation8], 64, 64, 4
    $region17: #{tpu_custom_call.1} parent=1 // pred_fallthru
      _
    // Predicated region
    $region18: #{tpu_custom_call.1} parent=1 // pred_check
      _
    $region19: #{tpu_custom_call.1} parent=1 // pred_check_branch
      %44 = sbr.rel (0) target = $region21
    $region20: #{tpu_custom_call.1} parent=1 // pred_region
      _
    $region21: #{tpu_custom_call.1} parent=1 // pred_fallthru
      _
    // Predicated region
    $region22: #{tpu_custom_call.1} parent=1 // pred_check
      _
    $region23: #{tpu_custom_call.1} parent=1 // pred_check_branch
      %46 = sbr.rel (0) target = $region25
    $region24: #{tpu_custom_call.1} parent=1 // pred_region
      %47 = dma.done [#allocation5], 256
    $region25: #{tpu_custom_call.1} parent=1 // pred_fallthru
      _
    // Predicated region
    $region26: #{tpu_custom_call.1} parent=1 // pred_check
      _
    $region27: #{tpu_custom_call.1} parent=1 // pred_check_branch
      %49 = sbr.rel (0) target = $region29
    $region28: #{tpu_custom_call.1} parent=1 // pred_region
      %50 = dma.done [#allocation8], 256
    $region29: #{tpu_custom_call.1} parent=1 // pred_fallthru
      _
    %v52 = vld [vmem:[#allocation4] sm:$0xff]
    %v53 = vld [vmem:[#allocation4 + $0x8] sm:$0xff]
    %vm54 = vcmask 261120
    %v55 = vsel %vm54, %v52, 0.0
    %56 = vadd.xlane.f32.xlu0 %v55
    %v57 = vpop.xlane.xlu0 %56
    %v58 = vsel %vm54, %v53, 0.0
    %59 = vadd.xlane.f32.xlu0 %v58
    %v60 = vpop.xlane.xlu0 %59
    %v61 = vrcp.pop 32.0
    %v62 = vmul.f32 %v57, %v61
    %v63 = vmul.f32 %v60, %v61
    %v64 = vsub.f32 %v52, %v62
    %v65 = vsub.f32 %v53, %v63
    %v66 = vmul.f32 %v64, %v64
    %v67 = vmul.f32 %v65, %v65
    %v68 = vsel %vm54, %v66, 0.0
    %69 = vadd.xlane.f32.xlu0 %v68
    %v70 = vpop.xlane.xlu0 %69
    %v71 = vsel %vm54, %v67, 0.0
    %72 = vadd.xlane.f32.xlu0 %v71
    %v73 = vpop.xlane.xlu0 %72
    %v74 = vmul.f32 %v70, %v61
    %v75 = vmul.f32 %v73, %v61
    %v76 = vadd.f32 %v74, 1e-05
    %v77 = vadd.f32 %v75, 1e-05
    %v78 = vrsqrt.pop %v76
    %v79 = vrsqrt.pop %v77
    %v80 = vmul.f32 %v64, %v78
    %v81 = vmul.f32 %v65, %v79
    %v82 = vld [vmem:[%s2] sm:$0x1]
    %v84 = vlaneseq
    %v85 = vshrl.u32 %v84, 7
    %v86 = vsub.s32 0, %v85
    %v87 = vrot.slane %v82, %v86
    %v89 = vmul.f32 %v80, %v87
    %v90 = vmul.f32 %v81, %v87
    %v91 = vld [vmem:[%s3] sm:$0x1]
    %v93 = vlaneseq
    %v94 = vshrl.u32 %v93, 7
    %v95 = vsub.s32 0, %v94
    %v96 = vrot.slane %v91, %v95
    %v98 = vadd.f32 %v89, %v96
    %v99 = vadd.f32 %v90, %v96
    %v100 = vpack.c.bf16 %v99, %v98
    %v101 = vld [vmem:[#allocation7] sm:$0xf]
    %v102 = vld [vmem:[#allocation7 + $0x4] sm:$0xf]
    %v103 = vld [vmem:[#allocation7 + $0x8] sm:$0xf]
    %v104 = vld [vmem:[#allocation7 + $0xc] sm:$0xf]
    %v105 = vld [vmem:[%s5] sm:$0x1]
    %v107 = vlaneseq
    %v108 = vshrl.u32 %v107, 7
    %v109 = vsub.s32 0, %v108
    %v110 = vrot.slane %v105, %v109
    %v116 = vunpack.c.l.b16 %v101
    %v117 = vunpack.c.l.b16 %v102
    %v118 = vunpack.c.l.b16 %v103
    %v119 = vunpack.c.l.b16 %v104
    %v120 = vpack.c.b16 %v117, %v116
    %v121 = vpack.c.b16 %v119, %v118
    %v125 = vsel %vm54, %v100, 0
    %127 = vmatprep.subr.bf16.mxu0 0
    %128 = vmatpush1.bf16.msra.mxu0 %v120
    %129 = vmatprep.subr.bf16.mxu0 0
    %130 = vmatpush1.bf16.msra.mxu0 %v121
    %131 = vmatprep.subr.bf16.mxu0 0
    %132 = vmatpush1.bf16.msra.mxu0 0
    %133 = vmatprep.subr.bf16.mxu0 0
    %134 = vmatpush1.bf16.msra.mxu0 0
    %135 = vmatprep.subr.bf16.mxu0 0
    %136 = vmatpush1.bf16.msra.mxu0 0
    %137 = vmatprep.subr.bf16.mxu0 0
    %138 = vmatpush1.bf16.msra.mxu0 0
    %139 = vmatprep.subr.bf16.mxu0 0
    %140 = vmatpush1.bf16.msra.mxu0 0
    %141 = vmatprep.subr.bf16.mxu0 0
    %142 = vmatpush1.bf16.msra.mxu0 0
    %143 = vmatprep.subr.bf16.mxu0 0
    %144 = vmatpush1.bf16.msra.mxu0 0
    %145 = vmatprep.subr.bf16.mxu0 0
    %146 = vmatpush1.bf16.msra.mxu0 0
    %147 = vmatprep.subr.bf16.mxu0 0
    %148 = vmatpush1.bf16.msra.mxu0 0
    %149 = vmatprep.subr.bf16.mxu0 0
    %150 = vmatpush1.bf16.msra.mxu0 0
    %151 = vmatprep.subr.bf16.mxu0 0
    %152 = vmatpush1.bf16.msra.mxu0 0
    %153 = vmatprep.subr.bf16.mxu0 0
    %154 = vmatpush1.bf16.msra.mxu0 0
    %155 = vmatprep.subr.bf16.mxu0 0
    %156 = vmatpush1.bf16.msra.mxu0 0
    %157 = vmatprep.subr.bf16.mxu0 0
    %158 = vmatpush1.bf16.msra.mxu0 0
    %159 = vmatprep.mubr.bf16.mxu0 0
    %160 = vmatmul.mubr.bf16.gmra.mrb[0].mxu0 %v125
    %v161 = vpop.f32.mrb[0].mxu0
    %v162 = vadd.f32 %v110, %v161
    %v163 = vpop.f32.mrb[0].mxu0
    %v164 = vpop.f32.mrb[0].mxu0
    %v165 = vadd.f32 %v110, %v164
    %v166 = vpop.f32.mrb[0].mxu0
    %167 = vdwg.mxu0
    %s168 = smul.u32 0, 16
    %v169 = vlaneseq
    %v170 = vshrl.u32 %v169, 7
    %v171 = vadd.s32 %v170, 8
    %v172 = vstv %s168
    %v173 = vadd.s32 %v170, %v172
    %v174 = vadd.s32 %v171, %v172
    %v175 = vlaneseq
    %v176 = vand.u32 %v175, 127
    %s177 = sld [smem:[#allocation3]]
    %v178 = vmul.u32 %v173, 2654435769
    %v179 = vmul.u32 %v174, 2654435769
    %v180 = vstv %s177
    %v181 = vadd.s32 %v180, %v178
    %v182 = vadd.s32 %v180, %v179
    %v183 = vmul.u32 %v176, 2246822507
    %v184 = vadd.s32 %v181, %v183
    %v185 = vadd.s32 %v182, %v183
    %v186 = vshrl.u32 %v184, 16
    %v187 = vshrl.u32 %v185, 16
    %v188 = vxor.u32 %v184, %v186
    %v189 = vxor.u32 %v185, %v187
    %v190 = vmul.u32 %v188, 2146121005
    %v191 = vmul.u32 %v189, 2146121005
    %v192 = vshrl.u32 %v190, 15
    %v193 = vshrl.u32 %v191, 15
    %v194 = vxor.u32 %v190, %v192
    %v195 = vxor.u32 %v191, %v193
    %v196 = vmul.u32 %v194, 2221713035
    %v197 = vmul.u32 %v195, 2221713035
    %v198 = vshrl.u32 %v196, 16
    %v199 = vshrl.u32 %v197, 16
    %v200 = vxor.u32 %v196, %v198
    %v201 = vxor.u32 %v197, %v199
    %v202 = vshrl.u32 %v200, 1
    %v203 = vshrl.u32 %v201, 1
    %vm204 = vcmp.lt.s32.totalorder %v202, 1932735283
    %vm205 = vcmp.lt.s32.totalorder %v203, 1932735283
    %v206 = vmul.f32 %v162, 1.1111112
    %v207 = vmul.f32 %v165, 1.1111112
    %v208 = vsel %vm204, %v206, 0.0
    %v209 = vsel %vm205, %v207, 0.0
    %v210 = vadd.f32 %v52, %v208
    %v211 = vadd.f32 %v53, %v209
    %212 = vst.msk [vmem:[#allocation9] sm:$0xff] %vm54, %v210
    %213 = vst.msk [vmem:[#allocation9 + $0x8] sm:$0xff] %vm54, %v211
    // Predicated region
    $region30: #{tpu_custom_call.1} parent=1 // pred_check
      _
    $region31: #{tpu_custom_call.1} parent=1 // pred_check_branch
      %215 = sbr.rel (0) target = $region33
    $region32: #{tpu_custom_call.1} parent=1 // pred_region
      %s217 = ssub.s32 256, 256
      %218 = vsyncadd [#allocation6], %s217
      %s219 = sshll.u32 [#allocation9], 4
      %s220 = int_to_ptr.vmem [resolvable:$true] %s219
      %225 = dma.vmem_to_hbm [thread:$0]  %s220, 256, %s6, [#allocation6], 128, 128, 8
    $region33: #{tpu_custom_call.1} parent=1 // pred_fallthru
      _
    // Predicated region
    $region34: #{tpu_custom_call.1} parent=1 // pred_check
      _
    $region35: #{tpu_custom_call.1} parent=1 // pred_check_branch
      %227 = sbr.rel (0) target = $region37
    $region36: #{tpu_custom_call.1} parent=1 // pred_region
      %228 = dma.done [#allocation6], 256
    $region37: #{tpu_custom_call.1} parent=1 // pred_fallthru
      _
    %229 = vsyncpa [#allocation5], 1
    %230 = vsyncpa [#allocation8], 1
    %231 = vsyncpa [#allocation6], 1

</llo_original>
